<compile_context>
chip_gen: v7x
topology: tpu7x:2x2x1
jax: 0.10.0
libtpu: 0.0.40
codegen_flags: <defaults>
</compile_context>

<pallas_src>
import functools

import jax
import jax.numpy as jnp
from jax.experimental import pallas as pl
from jax.experimental.pallas import tpu as pltpu


_VMEM_LIMIT = 32 * 1024 * 1024  # explicit scoped-VMEM budget (safe on v5e/v6e/v7x)


def _vmem_specs(n):
    return [pl.BlockSpec(memory_space=pltpu.MemorySpace.VMEM) for _ in range(n)]


# ---------------------------------------------------------------------------
# Kernel 1: fused Conv1d (K shifted 2-D matmuls) + folded BatchNorm + activation
#   x2_ref : (R + K - 1, C)  flattened padded input rows (R = B * L_pad)
#   w_ref  : (K, C, F)       conv weight with BN scale folded in
#   b_ref  : (1, F)          folded BN bias
#   o_ref  : (R, F)
# ---------------------------------------------------------------------------
def _conv_bn_act_kernel(x2_ref, w_ref, b_ref, o_ref, *, ksize: int, act: str):
    rows = o_ref.shape[0]
    acc = jnp.zeros(o_ref.shape, jnp.float32)
    for k in range(ksize):  # static, tiny tap count (3 / 5)
        xk = x2_ref[k:k + rows, :]                              # (R, C) contiguous slice
        acc = acc + jnp.dot(xk, w_ref[k], preferred_element_type=jnp.float32)
    y = acc + b_ref[...]
    if act == "relu":
        y = jnp.maximum(y, 0.0)
    elif act == "exp":
        y = jnp.exp(y)
    o_ref[...] = y.astype(o_ref.dtype)


def conv1d_bn_act(h, w_kcf, gamma, beta, mean, var, *, padding, act, eps=1e-5):
    """h: (B, L, C) channels-last.  Returns (B, L_out, F)."""
    B, L, C = h.shape
    K, _, F = w_kcf.shape
    L_pad = L + 2 * padding
    L_out = L_pad - K + 1

    # Fold eval-mode BatchNorm into the conv weight / bias (glue-side, free).
    scale = gamma / jnp.sqrt(var + eps)                         # (F,)
    w_folded = (w_kcf * scale[None, None, :]).astype(jnp.float32)
    b_folded = (beta - mean * scale).reshape(1, F).astype(jnp.float32)

    # Zero-pad along L, flatten batch into rows (lane-dense 2-D layout) and
    # append K-1 zero rows so every shifted slice inside the kernel is in-bounds.
    x_pad = jnp.pad(h, ((0, 0), (padding, padding), (0, 0)))
    x2 = x_pad.reshape(B * L_pad, C)
    x2 = jnp.pad(x2, ((0, K - 1), (0, 0)))

    R = B * L_pad
    out2 = pl.pallas_call(
        functools.partial(_conv_bn_act_kernel, ksize=K, act=act),
        out_shape=jax.ShapeDtypeStruct((R, F), h.dtype),
        in_specs=_vmem_specs(3),
        out_specs=pl.BlockSpec(memory_space=pltpu.MemorySpace.VMEM),
        compiler_params=pltpu.CompilerParams(vmem_limit_bytes=_VMEM_LIMIT),
    )(x2, w_folded, b_folded)

    # Rows whose window would straddle a batch boundary are invalid -> drop.
    return out2.reshape(B, L_pad, F)[:, :L_out, :]


# ---------------------------------------------------------------------------
# Kernel 2: MaxPool1d (floor mode, stride == kernel, like nn.MaxPool1d default)
#   x_ref : (B * L_out, pool, F)   o_ref : (B * L_out, F)
# ---------------------------------------------------------------------------
def _maxpool_kernel(x_ref, o_ref):
    o_ref[...] = jnp.max(x_ref[...], axis=1)


def maxpool1d(h, pool):
    """h: (B, L, F) -> (B, L // pool, F)."""
    B, L, F = h.shape
    L_out = L // pool
    x = h[:, :L_out * pool, :].reshape(B * L_out, pool, F)
    out = pl.pallas_call(
        _maxpool_kernel,
        out_shape=jax.ShapeDtypeStruct((B * L_out, F), h.dtype),
        in_specs=_vmem_specs(1),
        out_specs=pl.BlockSpec(memory_space=pltpu.MemorySpace.VMEM),
        compiler_params=pltpu.CompilerParams(vmem_limit_bytes=_VMEM_LIMIT),
    )(x)
    return out.reshape(B, L_out, F)


# ---------------------------------------------------------------------------
# Kernel 3: fused dense (matmul + bias + optional ReLU) for the FC stack
# ---------------------------------------------------------------------------
def _dense_kernel(a_ref, w_ref, b_ref, o_ref, *, act: str):
    y = jnp.dot(a_ref[...], w_ref[...], preferred_element_type=jnp.float32)
    y = y + b_ref[...]
    if act == "relu":
        y = jnp.maximum(y, 0.0)
    o_ref[...] = y.astype(o_ref.dtype)


def dense(h, w, b, *, act="none"):
    M, K = h.shape
    _, N = w.shape
    return pl.pallas_call(
        functools.partial(_dense_kernel, act=act),
        out_shape=jax.ShapeDtypeStruct((M, N), h.dtype),
        in_specs=_vmem_specs(3),
        out_specs=pl.BlockSpec(memory_space=pltpu.MemorySpace.VMEM),
        compiler_params=pltpu.CompilerParams(vmem_limit_bytes=_VMEM_LIMIT),
    )(h, w.astype(jnp.float32), b.reshape(1, N).astype(jnp.float32))


# ---------------------------------------------------------------------------
# Basset forward (eval mode, useEmbeddings=False)
# ---------------------------------------------------------------------------
def basset_forward(x_bcl, hp, params):
    """x_bcl: (B, C_in, L) exactly like the PyTorch module's input."""
    B = x_bcl.shape[0]
    h = jnp.transpose(x_bcl, (0, 2, 1))  # channels-last so features sit on lanes

    act1 = "exp" if hp["CNN1_useexponential"] else "relu"
    # layer1: Conv1d + BN + (ReLU|Exponential) + MaxPool
    h = conv1d_bn_act(h, params["w1"], params["bn1_g"], params["bn1_b"],
                      params["bn1_m"], params["bn1_v"],
                      padding=hp["CNN1_padding"], act=act1)
    h = maxpool1d(h, hp["CNN1_poolsize"])
    # dropout1/2/3/4/5 are identity in eval mode.
    # TODO(synk): training-mode dropout (pltpu.prng_random_bits) intentionally omitted.

    # layer2: Conv1d + BN + ReLU (no pool)
    h = conv1d_bn_act(h, params["w2"], params["bn2_g"], params["bn2_b"],
                      params["bn2_m"], params["bn2_v"],
                      padding=hp["CNN2_padding"], act="relu")
    # layer3: Conv1d + BN + ReLU + MaxPool
    h = conv1d_bn_act(h, params["w3"], params["bn3_g"], params["bn3_b"],
                      params["bn3_m"], params["bn3_v"],
                      padding=hp["CNN3_padding"], act="relu")
    h = maxpool1d(h, hp["CNN3_poolsize"])

    # Flatten in PyTorch's channel-major (B, C, L) order.
    h = jnp.transpose(h, (0, 2, 1)).reshape(B, -1)

    h = dense(h, params["fc1_w"], params["fc1_b"], act="relu")
    h = dense(h, params["fc2_w"], params["fc2_b"], act="relu")
    out = dense(h, params["fc3_w"], params["fc3_b"], act="none")
    return out


# ---------------------------------------------------------------------------
# Pure-JAX reference (independent implementation, for correctness check)
# ---------------------------------------------------------------------------
def reference_forward(x_bcl, hp, params, eps=1e-5):
    h = jnp.transpose(x_bcl, (0, 2, 1))

    def conv_bn_act(h, w, g, b, m, v, pad, act):
        y = jax.lax.conv_general_dilated(
            h, w, window_strides=(1,), padding=[(pad, pad)],
            dimension_numbers=("NWC", "WIO", "NWC"))
        s = g / jnp.sqrt(v + eps)
        y = y * s + (b - m * s)
        if act == "relu":
            return jnp.maximum(y, 0.0)
        if act == "exp":
            return jnp.exp(y)
        return y

    def pool(h, k):
        B, L, F = h.shape
        Lo = L // k
        return h[:, :Lo * k, :].reshape(B, Lo, k, F).max(axis=2)

    act1 = "exp" if hp["CNN1_useexponential"] else "relu"
    h = conv_bn_act(h, params["w1"], params["bn1_g"], params["bn1_b"],
                    params["bn1_m"], params["bn1_v"], hp["CNN1_padding"], act1)
    h = pool(h, hp["CNN1_poolsize"])
    h = conv_bn_act(h, params["w2"], params["bn2_g"], params["bn2_b"],
                    params["bn2_m"], params["bn2_v"], hp["CNN2_padding"], "relu")
    h = conv_bn_act(h, params["w3"], params["bn3_g"], params["bn3_b"],
                    params["bn3_m"], params["bn3_v"], hp["CNN3_padding"], "relu")
    h = pool(h, hp["CNN3_poolsize"])
    h = jnp.transpose(h, (0, 2, 1)).reshape(h.shape[0], -1)
    h = jnp.maximum(h @ params["fc1_w"] + params["fc1_b"], 0.0)
    h = jnp.maximum(h @ params["fc2_w"] + params["fc2_b"], 0.0)
    return h @ params["fc3_w"] + params["fc3_b"]


if __name__ == "__main__":
    # Small shapes consistent with the module.
    hp = dict(
        input_channels=4,
        CNN1_filters=32, CNN1_filtersize=5, CNN1_poolsize=2, CNN1_padding=2,
        CNN1_useexponential=False,
        CNN2_filters=32, CNN2_filtersize=3, CNN2_poolsize=2, CNN2_padding=1,
        CNN3_filters=32, CNN3_filtersize=3, CNN3_poolsize=2, CNN3_padding=1,
        FC1_inputsize=128, FC1_outputsize=64, FC2_outputsize=32, num_classes=2,
    )
    B, L = 2, 16
    C_in = hp["input_channels"]
    F1, F2, F3 = hp["CNN1_filters"], hp["CNN2_filters"], hp["CNN3_filters"]
    K1, K2, K3 = hp["CNN1_filtersize"], hp["CNN2_filtersize"], hp["CNN3_filtersize"]

    keys = jax.random.split(jax.random.PRNGKey(0), 24)

    def bn_params(kg, kb, km, kv, F):
        return (jax.random.uniform(kg, (F,), minval=0.5, maxval=1.5),
                0.1 * jax.random.normal(kb, (F,)),
                0.1 * jax.random.normal(km, (F,)),
                jax.random.uniform(kv, (F,), minval=0.5, maxval=1.5))

    params = {}
    params["w1"] = 0.2 * jax.random.normal(keys[0], (K1, C_in, F1), jnp.float32)
    (params["bn1_g"], params["bn1_b"],
     params["bn1_m"], params["bn1_v"]) = bn_params(keys[1], keys[2], keys[3], keys[4], F1)
    params["w2"] = 0.2 * jax.random.normal(keys[5], (K2, F1, F2), jnp.float32)
    (params["bn2_g"], params["bn2_b"],
     params["bn2_m"], params["bn2_v"]) = bn_params(keys[6], keys[7], keys[8], keys[9], F2)
    params["w3"] = 0.2 * jax.random.normal(keys[10], (K3, F2, F3), jnp.float32)
    (params["bn3_g"], params["bn3_b"],
     params["bn3_m"], params["bn3_v"]) = bn_params(keys[11], keys[12], keys[13], keys[14], F3)
    params["fc1_w"] = 0.2 * jax.random.normal(keys[15], (hp["FC1_inputsize"], hp["FC1_outputsize"]), jnp.float32)
    params["fc1_b"] = 0.1 * jax.random.normal(keys[16], (hp["FC1_outputsize"],), jnp.float32)
    params["fc2_w"] = 0.2 * jax.random.normal(keys[17], (hp["FC1_outputsize"], hp["FC2_outputsize"]), jnp.float32)
    params["fc2_b"] = 0.1 * jax.random.normal(keys[18], (hp["FC2_outputsize"],), jnp.float32)
    params["fc3_w"] = 0.2 * jax.random.normal(keys[19], (hp["FC2_outputsize"], hp["num_classes"]), jnp.float32)
    params["fc3_b"] = 0.1 * jax.random.normal(keys[20], (hp["num_classes"],), jnp.float32)

    x = jax.random.normal(keys[21], (B, C_in, L), jnp.float32)

    out = basset_forward(x, hp, params)
    out = jax.block_until_ready(out)

    # Same checks the PyTorch module implies.
    assert out.shape == (B, hp["num_classes"]), out.shape
    assert not bool(jnp.isnan(out).any()), "NaN in output"

    ref = reference_forward(x, hp, params)
    assert jnp.allclose(out, ref, atol=1e-3, rtol=1e-3), (
        f"mismatch vs reference: max abs diff {float(jnp.max(jnp.abs(out - ref)))}")

    print("KERNEL_OK")
</pallas_src>

<mosaic_0001>
module attributes {stable_mosaic.version = 11 : i64} {
  func.func @_conv_bn_act_kernel(%arg0: memref<44x4xf32, #tpu.memory_space<vmem>>, %arg1: memref<5x4x32xf32, #tpu.memory_space<vmem>>, %arg2: memref<1x32xf32, #tpu.memory_space<vmem>>, %arg3: memref<40x32xf32, #tpu.memory_space<vmem>>) attributes {dimension_semantics = [], scalar_prefetch = 0 : i64, scratch_operands = 0 : i64, tpu.core_type = #tpu.core_type<tc>} {
    %cst = arith.constant 0.000000e+00 : f32
    %0 = vector.broadcast %cst : f32 to vector<40x32xf32>
    %c0 = arith.constant 0 : index
    %c0_0 = arith.constant 0 : index
    %1 = vector.load %arg0[%c0, %c0_0] : memref<44x4xf32, #tpu.memory_space<vmem>>, vector<40x4xf32>
    %c0_1 = arith.constant 0 : index
    %c0_2 = arith.constant 0 : index
    %c0_3 = arith.constant 0 : index
    %2 = vector.load %arg1[%c0_1, %c0_2, %c0_3] : memref<5x4x32xf32, #tpu.memory_space<vmem>>, vector<1x4x32xf32>
    %3 = vector.shape_cast %2 : vector<1x4x32xf32> to vector<4x32xf32>
    %cst_4 = arith.constant dense<0.000000e+00> : vector<40x32xf32>
    %4 = tpu.matmul %1, %3, %cst_4 {dimension_numbers = #tpu.dot_dimension_numbers<[1], [0], [0], [1], [0, 0, 1, 1], [], []>} : vector<40x4xf32>, vector<4x32xf32>, vector<40x32xf32> -> vector<40x32xf32>
    %5 = arith.addf %0, %4 : vector<40x32xf32>
    %c1 = arith.constant 1 : index
    %c0_5 = arith.constant 0 : index
    %6 = vector.load %arg0[%c1, %c0_5] : memref<44x4xf32, #tpu.memory_space<vmem>>, vector<40x4xf32>
    %c1_6 = arith.constant 1 : index
    %c0_7 = arith.constant 0 : index
    %c0_8 = arith.constant 0 : index
    %7 = vector.load %arg1[%c1_6, %c0_7, %c0_8] : memref<5x4x32xf32, #tpu.memory_space<vmem>>, vector<1x4x32xf32>
    %8 = vector.shape_cast %7 : vector<1x4x32xf32> to vector<4x32xf32>
    %cst_9 = arith.constant dense<0.000000e+00> : vector<40x32xf32>
    %9 = tpu.matmul %6, %8, %cst_9 {dimension_numbers = #tpu.dot_dimension_numbers<[1], [0], [0], [1], [0, 0, 1, 1], [], []>} : vector<40x4xf32>, vector<4x32xf32>, vector<40x32xf32> -> vector<40x32xf32>
    %10 = arith.addf %5, %9 : vector<40x32xf32>
    %c2 = arith.constant 2 : index
    %c0_10 = arith.constant 0 : index
    %11 = vector.load %arg0[%c2, %c0_10] : memref<44x4xf32, #tpu.memory_space<vmem>>, vector<40x4xf32>
    %c2_11 = arith.constant 2 : index
    %c0_12 = arith.constant 0 : index
    %c0_13 = arith.constant 0 : index
    %12 = vector.load %arg1[%c2_11, %c0_12, %c0_13] : memref<5x4x32xf32, #tpu.memory_space<vmem>>, vector<1x4x32xf32>
    %13 = vector.shape_cast %12 : vector<1x4x32xf32> to vector<4x32xf32>
    %cst_14 = arith.constant dense<0.000000e+00> : vector<40x32xf32>
    %14 = tpu.matmul %11, %13, %cst_14 {dimension_numbers = #tpu.dot_dimension_numbers<[1], [0], [0], [1], [0, 0, 1, 1], [], []>} : vector<40x4xf32>, vector<4x32xf32>, vector<40x32xf32> -> vector<40x32xf32>
    %15 = arith.addf %10, %14 : vector<40x32xf32>
    %c3 = arith.constant 3 : index
    %c0_15 = arith.constant 0 : index
    %16 = vector.load %arg0[%c3, %c0_15] : memref<44x4xf32, #tpu.memory_space<vmem>>, vector<40x4xf32>
    %c3_16 = arith.constant 3 : index
    %c0_17 = arith.constant 0 : index
    %c0_18 = arith.constant 0 : index
    %17 = vector.load %arg1[%c3_16, %c0_17, %c0_18] : memref<5x4x32xf32, #tpu.memory_space<vmem>>, vector<1x4x32xf32>
    %18 = vector.shape_cast %17 : vector<1x4x32xf32> to vector<4x32xf32>
    %cst_19 = arith.constant dense<0.000000e+00> : vector<40x32xf32>
    %19 = tpu.matmul %16, %18, %cst_19 {dimension_numbers = #tpu.dot_dimension_numbers<[1], [0], [0], [1], [0, 0, 1, 1], [], []>} : vector<40x4xf32>, vector<4x32xf32>, vector<40x32xf32> -> vector<40x32xf32>
    %20 = arith.addf %15, %19 : vector<40x32xf32>
    %c4 = arith.constant 4 : index
    %c0_20 = arith.constant 0 : index
    %21 = vector.load %arg0[%c4, %c0_20] : memref<44x4xf32, #tpu.memory_space<vmem>>, vector<40x4xf32>
    %c4_21 = arith.constant 4 : index
    %c0_22 = arith.constant 0 : index
    %c0_23 = arith.constant 0 : index
    %22 = vector.load %arg1[%c4_21, %c0_22, %c0_23] : memref<5x4x32xf32, #tpu.memory_space<vmem>>, vector<1x4x32xf32>
    %23 = vector.shape_cast %22 : vector<1x4x32xf32> to vector<4x32xf32>
    %cst_24 = arith.constant dense<0.000000e+00> : vector<40x32xf32>
    %24 = tpu.matmul %21, %23, %cst_24 {dimension_numbers = #tpu.dot_dimension_numbers<[1], [0], [0], [1], [0, 0, 1, 1], [], []>} : vector<40x4xf32>, vector<4x32xf32>, vector<40x32xf32> -> vector<40x32xf32>
    %25 = arith.addf %20, %24 : vector<40x32xf32>
    %c0_25 = arith.constant 0 : index
    %c0_26 = arith.constant 0 : index
    %26 = vector.load %arg2[%c0_25, %c0_26] : memref<1x32xf32, #tpu.memory_space<vmem>>, vector<1x32xf32>
    %27 = vector.broadcast %26 : vector<1x32xf32> to vector<40x32xf32>
    %28 = arith.addf %25, %27 : vector<40x32xf32>
    %cst_27 = arith.constant 0.000000e+00 : f32
    %29 = vector.broadcast %cst_27 : f32 to vector<40x32xf32>
    %30 = arith.maximumf %28, %29 : vector<40x32xf32>
    %c0_28 = arith.constant 0 : index
    %c0_29 = arith.constant 0 : index
    %31 = vector.load %arg3[%c0_28, %c0_29] : memref<40x32xf32, #tpu.memory_space<vmem>>, vector<40x32xf32>
    tpu.vector_store %arg3[%c0_28, %c0_29], %30 {strides = array<i32>} : memref<40x32xf32, #tpu.memory_space<vmem>>, vector<40x32xf32>,
    return
  }
}

</mosaic_0001>

<llo_original>
// kernel: tpu_custom_call.1
$region0: #{tpu_custom_call.1}
  #allocation0 [shape = 'u32[]', space=smem, size = 0x4, offset = 0x4, fixed_abs, tag = 'smem constant byte address 0x4 - core index']
  #allocation1 [shape = 'u32[144,128]{1,0:T(1,128)}', space=vmem, size = 0x12000, scoped, tag = 'internal scratch']
  %s0 = inlined_call_operand.vmem [shape: f32[44,4], index: 0, kind: input, shape index: {}]
  %s1 = inlined_call_operand.vmem [shape: f32[5,4,32], index: 1, kind: input, shape index: {}]
  %s2 = inlined_call_operand.vmem [shape: f32[1,32], index: 2, kind: input, shape index: {}]
  %s3 = inlined_call_operand.vmem [shape: f32[40,32], index: 3, kind: output, shape index: {}]
  %s4 = sld [smem:[#allocation0]]
  $region22: #{tpu_custom_call.1} parent=0
    _
  %s6 = ssub.s32 1, %s4
  %s7 = scalar_select 0, %s6, %s4
  // Predicated region
  $region2: #{tpu_custom_call.1} parent=0 // pred_check
    _
  $region3: #{tpu_custom_call.1} parent=0 // pred_check_branch
    %9 = sbr.rel (0) target = $region5
  $region4: #{tpu_custom_call.1} parent=0 // pred_region
    _
  $region5: #{tpu_custom_call.1} parent=0 // pred_fallthru
    _
  // Predicated region
  $region6: #{tpu_custom_call.1} parent=0 // pred_check
    _
  $region7: #{tpu_custom_call.1} parent=0 // pred_check_branch
    %11 = sbr.rel (0) target = $region9
  $region8: #{tpu_custom_call.1} parent=0 // pred_region
    _
  $region9: #{tpu_custom_call.1} parent=0 // pred_fallthru
    _
  // Predicated region
  $region10: #{tpu_custom_call.1} parent=0 // pred_check
    _
  $region11: #{tpu_custom_call.1} parent=0 // pred_check_branch
    %13 = sbr.rel (0) target = $region13
  $region12: #{tpu_custom_call.1} parent=0 // pred_region
    _
  $region13: #{tpu_custom_call.1} parent=0 // pred_fallthru
    _
  %v14 = vld [vmem:[%s0] sm:$0xff]
  %v15 = vld [vmem:[%s0 + $0x8] sm:$0xff]
  %v16 = vld [vmem:[%s0 + $0x10] sm:$0xff]
  %v17 = vld [vmem:[%s0 + $0x18] sm:$0xff]
  %v18 = vld [vmem:[%s0 + $0x20] sm:$0xff]
  %v19 = vld [vmem:[%s1] sm:$0xf]
  %v20 = vld [vmem:[%s0 + $0x1] sm:$0xff]
  %v21 = vld [vmem:[%s0 + $0x9] sm:$0xff]
  %v22 = vld [vmem:[%s0 + $0x11] sm:$0xff]
  %v23 = vld [vmem:[%s0 + $0x19] sm:$0xff]
  %v24 = vld [vmem:[%s0 + $0x21] sm:$0xff]
  %s25 = scalar_lea.vmem %s1, 4
  %v26 = vld [vmem:[%s25] sm:$0xf]
  %vm27 = vcmask 31744
  %v29 = vsel %vm27, %v20, 0
  %v32 = vsel %vm27, %v21, 0
  %v35 = vsel %vm27, %v22, 0
  %v38 = vsel %vm27, %v23, 0
  %v41 = vsel %vm27, %v24, 0
  %vm43 = vcmask 1043456
  %v45 = vsel %vm43, %v26, 0
  %47 = vmatprep.subr.mxu0 0.0
  %48 = vmatpush1.msra.mxu0 %v45
  %49 = vmatprep.subr.mxu0 0.0
  %50 = vmatpush1.msra.mxu0 0.0
  %51 = vmatprep.subr.mxu0 0.0
  %52 = vmatpush1.msra.mxu0 0.0
  %53 = vmatprep.subr.mxu0 0.0
  %54 = vmatpush1.msra.mxu0 0.0
  %55 = vmatprep.subr.mxu0 0.0
  %56 = vmatpush1.msra.mxu0 0.0
  %57 = vmatprep.subr.mxu0 0.0
  %58 = vmatpush1.msra.mxu0 0.0
  %59 = vmatprep.subr.mxu0 0.0
  %60 = vmatpush1.msra.mxu0 0.0
  %61 = vmatprep.subr.mxu0 0.0
  %62 = vmatpush1.msra.mxu0 0.0
  %63 = vmatprep.subr.mxu0 0.0
  %64 = vmatpush1.msra.mxu0 0.0
  %65 = vmatprep.subr.mxu0 0.0
  %66 = vmatpush1.msra.mxu0 0.0
  %67 = vmatprep.subr.mxu0 0.0
  %68 = vmatpush1.msra.mxu0 0.0
  %69 = vmatprep.subr.mxu0 0.0
  %70 = vmatpush1.msra.mxu0 0.0
  %71 = vmatprep.subr.mxu0 0.0
  %72 = vmatpush1.msra.mxu0 0.0
  %73 = vmatprep.subr.mxu0 0.0
  %74 = vmatpush1.msra.mxu0 0.0
  %75 = vmatprep.subr.mxu0 0.0
  %76 = vmatpush1.msra.mxu0 0.0
  %77 = vmatprep.subr.mxu0 0.0
  %78 = vmatpush1.msra.mxu0 0.0
  %79 = vmatprep.subr.mxu0 0.0
  %80 = vmatpush1.msra.mxu0 0.0
  %81 = vmatprep.subr.mxu0 0.0
  %82 = vmatpush1.msra.mxu0 0.0
  %83 = vmatprep.subr.mxu0 0.0
  %84 = vmatpush1.msra.mxu0 0.0
  %85 = vmatprep.subr.mxu0 0.0
  %86 = vmatpush1.msra.mxu0 0.0
  %87 = vmatprep.subr.mxu0 0.0
  %88 = vmatpush1.msra.mxu0 0.0
  %89 = vmatprep.subr.mxu0 0.0
  %90 = vmatpush1.msra.mxu0 0.0
  %91 = vmatprep.subr.mxu0 0.0
  %92 = vmatpush1.msra.mxu0 0.0
  %93 = vmatprep.subr.mxu0 0.0
  %94 = vmatpush1.msra.mxu0 0.0
  %95 = vmatprep.subr.mxu0 0.0
  %96 = vmatpush1.msra.mxu0 0.0
  %97 = vmatprep.subr.mxu0 0.0
  %98 = vmatpush1.msra.mxu0 0.0
  %99 = vmatprep.subr.mxu0 0.0
  %100 = vmatpush1.msra.mxu0 0.0
  %101 = vmatprep.subr.mxu0 0.0
  %102 = vmatpush1.msra.mxu0 0.0
  %103 = vmatprep.subr.mxu0 0.0
  %104 = vmatpush1.msra.mxu0 0.0
  %105 = vmatprep.subr.mxu0 0.0
  %106 = vmatpush1.msra.mxu0 0.0
  %107 = vmatprep.subr.mxu0 0.0
  %108 = vmatpush1.msra.mxu0 0.0
  %109 = vmatprep.subr.mxu0 0.0
  %110 = vmatpush1.msra.mxu0 0.0
  %111 = vmatprep.mubr.f32.mxu0 0.0
  %112 = vmatmul.mubr.f32.gmra.mrb[0].mxu0 %v29
  %v113 = vpop.f32.mrb[0].mxu0
  %v114 = vadd.f32 0.0, %v113
  %v115 = vpop.f32.mrb[0].mxu0
  %116 = vmatprep.mubr.f32.mxu0 0.0
  %117 = vmatmul.mubr.f32.gmra.mrb[0].mxu0 %v32
  %v118 = vpop.f32.mrb[0].mxu0
  %v119 = vadd.f32 0.0, %v118
  %v120 = vpop.f32.mrb[0].mxu0
  %121 = vmatprep.mubr.f32.mxu0 0.0
  %122 = vmatmul.mubr.f32.gmra.mrb[0].mxu0 %v35
  %v123 = vpop.f32.mrb[0].mxu0
  %v124 = vadd.f32 0.0, %v123
  %v125 = vpop.f32.mrb[0].mxu0
  %126 = vmatprep.mubr.f32.mxu0 0.0
  %127 = vmatmul.mubr.f32.gmra.mrb[0].mxu0 %v38
  %v128 = vpop.f32.mrb[0].mxu0
  %v129 = vadd.f32 0.0, %v128
  %v130 = vpop.f32.mrb[0].mxu0
  %131 = vmatprep.mubr.f32.mxu0 0.0
  %132 = vmatmul.mubr.f32.gmra.mrb[0].mxu0 %v41
  %v133 = vpop.f32.mrb[0].mxu0
  %v134 = vadd.f32 0.0, %v133
  %v135 = vpop.f32.mrb[0].mxu0
  %136 = vdwg.mxu0
  %v138 = vsel %vm27, %v14, 0
  %v141 = vsel %vm27, %v15, 0
  %v144 = vsel %vm27, %v16, 0
  %v147 = vsel %vm27, %v17, 0
  %v150 = vsel %vm27, %v18, 0
  %v153 = vsel %vm43, %v19, 0
  %155 = vmatprep.subr.mxu0 0.0
  %156 = vmatpush1.msra.mxu0 %v153
  %157 = vmatprep.subr.mxu0 0.0
  %158 = vmatpush1.msra.mxu0 0.0
  %159 = vmatprep.subr.mxu0 0.0
  %160 = vmatpush1.msra.mxu0 0.0
  %161 = vmatprep.subr.mxu0 0.0
  %162 = vmatpush1.msra.mxu0 0.0
  %163 = vmatprep.subr.mxu0 0.0
  %164 = vmatpush1.msra.mxu0 0.0
  %165 = vmatprep.subr.mxu0 0.0
  %166 = vmatpush1.msra.mxu0 0.0
  %167 = vmatprep.subr.mxu0 0.0
  %168 = vmatpush1.msra.mxu0 0.0
  %169 = vmatprep.subr.mxu0 0.0
  %170 = vmatpush1.msra.mxu0 0.0
  %171 = vmatprep.subr.mxu0 0.0
  %172 = vmatpush1.msra.mxu0 0.0
  %173 = vmatprep.subr.mxu0 0.0
  %174 = vmatpush1.msra.mxu0 0.0
  %175 = vmatprep.subr.mxu0 0.0
  %176 = vmatpush1.msra.mxu0 0.0
  %177 = vmatprep.subr.mxu0 0.0
  %178 = vmatpush1.msra.mxu0 0.0
  %179 = vmatprep.subr.mxu0 0.0
  %180 = vmatpush1.msra.mxu0 0.0
  %181 = vmatprep.subr.mxu0 0.0
  %182 = vmatpush1.msra.mxu0 0.0
  %183 = vmatprep.subr.mxu0 0.0
  %184 = vmatpush1.msra.mxu0 0.0
  %185 = vmatprep.subr.mxu0 0.0
  %186 = vmatpush1.msra.mxu0 0.0
  %187 = vmatprep.subr.mxu0 0.0
  %188 = vmatpush1.msra.mxu0 0.0
  %189 = vmatprep.subr.mxu0 0.0
  %190 = vmatpush1.msra.mxu0 0.0
  %191 = vmatprep.subr.mxu0 0.0
  %192 = vmatpush1.msra.mxu0 0.0
  %193 = vmatprep.subr.mxu0 0.0
  %194 = vmatpush1.msra.mxu0 0.0
  %195 = vmatprep.subr.mxu0 0.0
  %196 = vmatpush1.msra.mxu0 0.0
  %197 = vmatprep.subr.mxu0 0.0
  %198 = vmatpush1.msra.mxu0 0.0
  %199 = vmatprep.subr.mxu0 0.0
  %200 = vmatpush1.msra.mxu0 0.0
  %201 = vmatprep.subr.mxu0 0.0
  %202 = vmatpush1.msra.mxu0 0.0
  %203 = vmatprep.subr.mxu0 0.0
  %204 = vmatpush1.msra.mxu0 0.0
  %205 = vmatprep.subr.mxu0 0.0
  %206 = vmatpush1.msra.mxu0 0.0
  %207 = vmatprep.subr.mxu0 0.0
  %208 = vmatpush1.msra.mxu0 0.0
  %209 = vmatprep.subr.mxu0 0.0
  %210 = vmatpush1.msra.mxu0 0.0
  %211 = vmatprep.subr.mxu0 0.0
  %212 = vmatpush1.msra.mxu0 0.0
  %213 = vmatprep.subr.mxu0 0.0
  %214 = vmatpush1.msra.mxu0 0.0
  %215 = vmatprep.subr.mxu0 0.0
  %216 = vmatpush1.msra.mxu0 0.0
  %217 = vmatprep.subr.mxu0 0.0
  %218 = vmatpush1.msra.mxu0 0.0
  %219 = vmatprep.mubr.f32.mxu0 0.0
  %220 = vmatmul.mubr.f32.gmra.mrb[0].mxu0 %v138
  %v221 = vpop.f32.mrb[0].mxu0
  %v222 = vadd.f32 %v114, %v221
  %v223 = vpop.f32.mrb[0].mxu0
  %224 = vmatprep.mubr.f32.mxu0 0.0
  %225 = vmatmul.mubr.f32.gmra.mrb[0].mxu0 %v141
  %v226 = vpop.f32.mrb[0].mxu0
  %v227 = vadd.f32 %v119, %v226
  %v228 = vpop.f32.mrb[0].mxu0
  %229 = vmatprep.mubr.f32.mxu0 0.0
  %230 = vmatmul.mubr.f32.gmra.mrb[0].mxu0 %v144
  %v231 = vpop.f32.mrb[0].mxu0
  %v232 = vadd.f32 %v124, %v231
  %v233 = vpop.f32.mrb[0].mxu0
  %234 = vmatprep.mubr.f32.mxu0 0.0
  %235 = vmatmul.mubr.f32.gmra.mrb[0].mxu0 %v147
  %v236 = vpop.f32.mrb[0].mxu0
  %v237 = vadd.f32 %v129, %v236
  %v238 = vpop.f32.mrb[0].mxu0
  %239 = vmatprep.mubr.f32.mxu0 0.0
  %240 = vmatmul.mubr.f32.gmra.mrb[0].mxu0 %v150
  %v241 = vpop.f32.mrb[0].mxu0
  %v242 = vadd.f32 %v134, %v241
  %v243 = vpop.f32.mrb[0].mxu0
  %244 = vdwg.mxu0
  %v245 = vld [vmem:[%s0 + $0x2] sm:$0xff]
  %v246 = vld [vmem:[%s0 + $0xa] sm:$0xff]
  %v247 = vld [vmem:[%s0 + $0x12] sm:$0xff]
  %v248 = vld [vmem:[%s0 + $0x1a] sm:$0xff]
  %v249 = vld [vmem:[%s0 + $0x22] sm:$0xff]
  %s250 = scalar_lea.vmem %s1, 8
  %v251 = vld [vmem:[%s250] sm:$0xf]
  %v253 = vsel %vm27, %v245, 0
  %v256 = vsel %vm27, %v246, 0
  %v259 = vsel %vm27, %v247, 0
  %v262 = vsel %vm27, %v248, 0
  %v265 = vsel %vm27, %v249, 0
  %v268 = vsel %vm43, %v251, 0
  %270 = vmatprep.subr.mxu0 0.0
  %271 = vmatpush1.msra.mxu0 %v268
  %272 = vmatprep.subr.mxu0 0.0
  %273 = vmatpush1.msra.mxu0 0.0
  %274 = vmatprep.subr.mxu0 0.0
  %275 = vmatpush1.msra.mxu0 0.0
  %276 = vmatprep.subr.mxu0 0.0
  %277 = vmatpush1.msra.mxu0 0.0
  %278 = vmatprep.subr.mxu0 0.0
  %279 = vmatpush1.msra.mxu0 0.0
  %280 = vmatprep.subr.mxu0 0.0
  %281 = vmatpush1.msra.mxu0 0.0
  %282 = vmatprep.subr.mxu0 0.0
  %283 = vmatpush1.msra.mxu0 0.0
  %284 = vmatprep.subr.mxu0 0.0
  %285 = vmatpush1.msra.mxu0 0.0
  %286 = vmatprep.subr.mxu0 0.0
  %287 = vmatpush1.msra.mxu0 0.0
  %288 = vmatprep.subr.mxu0 0.0
  %289 = vmatpush1.msra.mxu0 0.0
  %290 = vmatprep.subr.mxu0 0.0
  %291 = vmatpush1.msra.mxu0 0.0
  %292 = vmatprep.subr.mxu0 0.0
  %293 = vmatpush1.msra.mxu0 0.0
  %294 = vmatprep.subr.mxu0 0.0
  %295 = vmatpush1.msra.mxu0 0.0
  %296 = vmatprep.subr.mxu0 0.0
  %297 = vmatpush1.msra.mxu0 0.0
  %298 = vmatprep.subr.mxu0 0.0
  %299 = vmatpush1.msra.mxu0 0.0
  %300 = vmatprep.subr.mxu0 0.0
  %301 = vmatpush1.msra.mxu0 0.0
  %302 = vmatprep.subr.mxu0 0.0
  %303 = vmatpush1.msra.mxu0 0.0
  %304 = vmatprep.subr.mxu0 0.0
  %305 = vmatpush1.msra.mxu0 0.0
  %306 = vmatprep.subr.mxu0 0.0
  %307 = vmatpush1.msra.mxu0 0.0
  %308 = vmatprep.subr.mxu0 0.0
  %309 = vmatpush1.msra.mxu0 0.0
  %310 = vmatprep.subr.mxu0 0.0
  %311 = vmatpush1.msra.mxu0 0.0
  %312 = vmatprep.subr.mxu0 0.0
  %313 = vmatpush1.msra.mxu0 0.0
  %314 = vmatprep.subr.mxu0 0.0
  %315 = vmatpush1.msra.mxu0 0.0
  %316 = vmatprep.subr.mxu0 0.0
  %317 = vmatpush1.msra.mxu0 0.0
  %318 = vmatprep.subr.mxu0 0.0
  %319 = vmatpush1.msra.mxu0 0.0
  %320 = vmatprep.subr.mxu0 0.0
  %321 = vmatpush1.msra.mxu0 0.0
  %322 = vmatprep.subr.mxu0 0.0
  %323 = vmatpush1.msra.mxu0 0.0
  %324 = vmatprep.subr.mxu0 0.0
  %325 = vmatpush1.msra.mxu0 0.0
  %326 = vmatprep.subr.mxu0 0.0
  %327 = vmatpush1.msra.mxu0 0.0
  %328 = vmatprep.subr.mxu0 0.0
  %329 = vmatpush1.msra.mxu0 0.0
  %330 = vmatprep.subr.mxu0 0.0
  %331 = vmatpush1.msra.mxu0 0.0
  %332 = vmatprep.subr.mxu0 0.0
  %333 = vmatpush1.msra.mxu0 0.0
  %334 = vmatprep.mubr.f32.mxu0 0.0
  %335 = vmatmul.mubr.f32.gmra.mrb[0].mxu0 %v253
  %v336 = vpop.f32.mrb[0].mxu0
  %v337 = vadd.f32 0.0, %v336
  %v338 = vpop.f32.mrb[0].mxu0
  %339 = vmatprep.mubr.f32.mxu0 0.0
  %340 = vmatmul.mubr.f32.gmra.mrb[0].mxu0 %v256
  %v341 = vpop.f32.mrb[0].mxu0
  %v342 = vadd.f32 0.0, %v341
  %v343 = vpop.f32.mrb[0].mxu0
  %344 = vmatprep.mubr.f32.mxu0 0.0
  %345 = vmatmul.mubr.f32.gmra.mrb[0].mxu0 %v259
  %v346 = vpop.f32.mrb[0].mxu0
  %v347 = vadd.f32 0.0, %v346
  %v348 = vpop.f32.mrb[0].mxu0
  %349 = vmatprep.mubr.f32.mxu0 0.0
  %350 = vmatmul.mubr.f32.gmra.mrb[0].mxu0 %v262
  %v351 = vpop.f32.mrb[0].mxu0
  %v352 = vadd.f32 0.0, %v351
  %v353 = vpop.f32.mrb[0].mxu0
  %354 = vmatprep.mubr.f32.mxu0 0.0
  %355 = vmatmul.mubr.f32.gmra.mrb[0].mxu0 %v265
  %v356 = vpop.f32.mrb[0].mxu0
  %v357 = vadd.f32 0.0, %v356
  %v358 = vpop.f32.mrb[0].mxu0
  %359 = vdwg.mxu0
  %v360 = vadd.f32 %v222, %v337
  %v361 = vadd.f32 %v227, %v342
  %v362 = vadd.f32 %v232, %v347
  %v363 = vadd.f32 %v237, %v352
  %v364 = vadd.f32 %v242, %v357
  %v365 = vld [vmem:[%s0 + $0x3] sm:$0xff]
  %v366 = vld [vmem:[%s0 + $0xb] sm:$0xff]
  %v367 = vld [vmem:[%s0 + $0x13] sm:$0xff]
  %v368 = vld [vmem:[%s0 + $0x1b] sm:$0xff]
  %v369 = vld [vmem:[%s0 + $0x23] sm:$0xff]
  %s370 = scalar_lea.vmem %s1, 12
  %v371 = vld [vmem:[%s370] sm:$0xf]
  %v373 = vsel %vm27, %v365, 0
  %v376 = vsel %vm27, %v366, 0
  %v379 = vsel %vm27, %v367, 0
  %v382 = vsel %vm27, %v368, 0
  %v385 = vsel %vm27, %v369, 0
  %v388 = vsel %vm43, %v371, 0
  %390 = vmatprep.subr.mxu0 0.0
  %391 = vmatpush1.msra.mxu0 %v388
  %392 = vmatprep.subr.mxu0 0.0
  %393 = vmatpush1.msra.mxu0 0.0
  %394 = vmatprep.subr.mxu0 0.0
  %395 = vmatpush1.msra.mxu0 0.0
  %396 = vmatprep.subr.mxu0 0.0
  %397 = vmatpush1.msra.mxu0 0.0
  %398 = vmatprep.subr.mxu0 0.0
  %399 = vmatpush1.msra.mxu0 0.0
  %400 = vmatprep.subr.mxu0 0.0
  %401 = vmatpush1.msra.mxu0 0.0
  %402 = vmatprep.subr.mxu0 0.0
  %403 = vmatpush1.msra.mxu0 0.0
  %404 = vmatprep.subr.mxu0 0.0
  %405 = vmatpush1.msra.mxu0 0.0
  %406 = vmatprep.subr.mxu0 0.0
  %407 = vmatpush1.msra.mxu0 0.0
  %408 = vmatprep.subr.mxu0 0.0
  %409 = vmatpush1.msra.mxu0 0.0
  %410 = vmatprep.subr.mxu0 0.0
  %411 = vmatpush1.msra.mxu0 0.0
  %412 = vmatprep.subr.mxu0 0.0
  %413 = vmatpush1.msra.mxu0 0.0
  %414 = vmatprep.subr.mxu0 0.0
  %415 = vmatpush1.msra.mxu0 0.0
  %416 = vmatprep.subr.mxu0 0.0
  %417 = vmatpush1.msra.mxu0 0.0
  %418 = vmatprep.subr.mxu0 0.0
  %419 = vmatpush1.msra.mxu0 0.0
  %420 = vmatprep.subr.mxu0 0.0
  %421 = vmatpush1.msra.mxu0 0.0
  %422 = vmatprep.subr.mxu0 0.0
  %423 = vmatpush1.msra.mxu0 0.0
  %424 = vmatprep.subr.mxu0 0.0
  %425 = vmatpush1.msra.mxu0 0.0
  %426 = vmatprep.subr.mxu0 0.0
  %427 = vmatpush1.msra.mxu0 0.0
  %428 = vmatprep.subr.mxu0 0.0
  %429 = vmatpush1.msra.mxu0 0.0
  %430 = vmatprep.subr.mxu0 0.0
  %431 = vmatpush1.msra.mxu0 0.0
  %432 = vmatprep.subr.mxu0 0.0
  %433 = vmatpush1.msra.mxu0 0.0
  %434 = vmatprep.subr.mxu0 0.0
  %435 = vmatpush1.msra.mxu0 0.0
  %436 = vmatprep.subr.mxu0 0.0
  %437 = vmatpush1.msra.mxu0 0.0
  %438 = vmatprep.subr.mxu0 0.0
  %439 = vmatpush1.msra.mxu0 0.0
  %440 = vmatprep.subr.mxu0 0.0
  %441 = vmatpush1.msra.mxu0 0.0
  %442 = vmatprep.subr.mxu0 0.0
  %443 = vmatpush1.msra.mxu0 0.0
  %444 = vmatprep.subr.mxu0 0.0
  %445 = vmatpush1.msra.mxu0 0.0
  %446 = vmatprep.subr.mxu0 0.0
  %447 = vmatpush1.msra.mxu0 0.0
  %448 = vmatprep.subr.mxu0 0.0
  %449 = vmatpush1.msra.mxu0 0.0
  %450 = vmatprep.subr.mxu0 0.0
  %451 = vmatpush1.msra.mxu0 0.0
  %452 = vmatprep.subr.mxu0 0.0
  %453 = vmatpush1.msra.mxu0 0.0
  %454 = vmatprep.mubr.f32.mxu0 0.0
  %455 = vmatmul.mubr.f32.gmra.mrb[0].mxu0 %v373
  %v456 = vpop.f32.mrb[0].mxu0
  %v457 = vadd.f32 0.0, %v456
  %v458 = vpop.f32.mrb[0].mxu0
  %459 = vmatprep.mubr.f32.mxu0 0.0
  %460 = vmatmul.mubr.f32.gmra.mrb[0].mxu0 %v376
  %v461 = vpop.f32.mrb[0].mxu0
  %v462 = vadd.f32 0.0, %v461
  %v463 = vpop.f32.mrb[0].mxu0
  %464 = vmatprep.mubr.f32.mxu0 0.0
  %465 = vmatmul.mubr.f32.gmra.mrb[0].mxu0 %v379
  %v466 = vpop.f32.mrb[0].mxu0
  %v467 = vadd.f32 0.0, %v466
  %v468 = vpop.f32.mrb[0].mxu0
  %469 = vmatprep.mubr.f32.mxu0 0.0
  %470 = vmatmul.mubr.f32.gmra.mrb[0].mxu0 %v382
  %v471 = vpop.f32.mrb[0].mxu0
  %v472 = vadd.f32 0.0, %v471
  %v473 = vpop.f32.mrb[0].mxu0
  %474 = vmatprep.mubr.f32.mxu0 0.0
  %475 = vmatmul.mubr.f32.gmra.mrb[0].mxu0 %v385
  %v476 = vpop.f32.mrb[0].mxu0
  %v477 = vadd.f32 0.0, %v476
  %v478 = vpop.f32.mrb[0].mxu0
  %479 = vdwg.mxu0
  %v480 = vadd.f32 %v360, %v457
  %v481 = vadd.f32 %v361, %v462
  %v482 = vadd.f32 %v362, %v467
  %v483 = vadd.f32 %v363, %v472
  %v484 = vadd.f32 %v364, %v477
  %v485 = vld [vmem:[%s0 + $0x4] sm:$0xff]
  %v486 = vld [vmem:[%s0 + $0xc] sm:$0xff]
  %v487 = vld [vmem:[%s0 + $0x14] sm:$0xff]
  %v488 = vld [vmem:[%s0 + $0x1c] sm:$0xff]
  %v489 = vld [vmem:[%s0 + $0x24] sm:$0xff]
  %s490 = scalar_lea.vmem %s1, 16
  %v491 = vld [vmem:[%s490] sm:$0xf]
  %v493 = vsel %vm27, %v485, 0
  %v496 = vsel %vm27, %v486, 0
  %v499 = vsel %vm27, %v487, 0
  %v502 = vsel %vm27, %v488, 0
  %v505 = vsel %vm27, %v489, 0
  %v508 = vsel %vm43, %v491, 0
  %510 = vmatprep.subr.mxu0 0.0
  %511 = vmatpush1.msra.mxu0 %v508
  %512 = vmatprep.subr.mxu0 0.0
  %513 = vmatpush1.msra.mxu0 0.0
  %514 = vmatprep.subr.mxu0 0.0
  %515 = vmatpush1.msra.mxu0 0.0
  %516 = vmatprep.subr.mxu0 0.0
  %517 = vmatpush1.msra.mxu0 0.0
  %518 = vmatprep.subr.mxu0 0.0
  %519 = vmatpush1.msra.mxu0 0.0
  %520 = vmatprep.subr.mxu0 0.0
  %521 = vmatpush1.msra.mxu0 0.0
  %522 = vmatprep.subr.mxu0 0.0
  %523 = vmatpush1.msra.mxu0 0.0
  %524 = vmatprep.subr.mxu0 0.0
  %525 = vmatpush1.msra.mxu0 0.0
  %526 = vmatprep.subr.mxu0 0.0
  %527 = vmatpush1.msra.mxu0 0.0
  %528 = vmatprep.subr.mxu0 0.0
  %529 = vmatpush1.msra.mxu0 0.0
  %530 = vmatprep.subr.mxu0 0.0
  %531 = vmatpush1.msra.mxu0 0.0
  %532 = vmatprep.subr.mxu0 0.0
  %533 = vmatpush1.msra.mxu0 0.0
  %534 = vmatprep.subr.mxu0 0.0
  %535 = vmatpush1.msra.mxu0 0.0
  %536 = vmatprep.subr.mxu0 0.0
  %537 = vmatpush1.msra.mxu0 0.0
  %538 = vmatprep.subr.mxu0 0.0
  %539 = vmatpush1.msra.mxu0 0.0
  %540 = vmatprep.subr.mxu0 0.0
  %541 = vmatpush1.msra.mxu0 0.0
  %542 = vmatprep.subr.mxu0 0.0
  %543 = vmatpush1.msra.mxu0 0.0
  %544 = vmatprep.subr.mxu0 0.0
  %545 = vmatpush1.msra.mxu0 0.0
  %546 = vmatprep.subr.mxu0 0.0
  %547 = vmatpush1.msra.mxu0 0.0
  %548 = vmatprep.subr.mxu0 0.0
  %549 = vmatpush1.msra.mxu0 0.0
  %550 = vmatprep.subr.mxu0 0.0
  %551 = vmatpush1.msra.mxu0 0.0
  %552 = vmatprep.subr.mxu0 0.0
  %553 = vmatpush1.msra.mxu0 0.0
  %554 = vmatprep.subr.mxu0 0.0
  %555 = vmatpush1.msra.mxu0 0.0
  %556 = vmatprep.subr.mxu0 0.0
  %557 = vmatpush1.msra.mxu0 0.0
  %558 = vmatprep.subr.mxu0 0.0
  %559 = vmatpush1.msra.mxu0 0.0
  %560 = vmatprep.subr.mxu0 0.0
  %561 = vmatpush1.msra.mxu0 0.0
  %562 = vmatprep.subr.mxu0 0.0
  %563 = vmatpush1.msra.mxu0 0.0
  %564 = vmatprep.subr.mxu0 0.0
  %565 = vmatpush1.msra.mxu0 0.0
  %566 = vmatprep.subr.mxu0 0.0
  %567 = vmatpush1.msra.mxu0 0.0
  %568 = vmatprep.subr.mxu0 0.0
  %569 = vmatpush1.msra.mxu0 0.0
  %570 = vmatprep.subr.mxu0 0.0
  %571 = vmatpush1.msra.mxu0 0.0
  %572 = vmatprep.subr.mxu0 0.0
  %573 = vmatpush1.msra.mxu0 0.0
  %574 = vmatprep.mubr.f32.mxu0 0.0
  %575 = vmatmul.mubr.f32.gmra.mrb[0].mxu0 %v493
  %v576 = vpop.f32.mrb[0].mxu0
  %v577 = vadd.f32 0.0, %v576
  %v578 = vpop.f32.mrb[0].mxu0
  %579 = vmatprep.mubr.f32.mxu0 0.0
  %580 = vmatmul.mubr.f32.gmra.mrb[0].mxu0 %v496
  %v581 = vpop.f32.mrb[0].mxu0
  %v582 = vadd.f32 0.0, %v581
  %v583 = vpop.f32.mrb[0].mxu0
  %584 = vmatprep.mubr.f32.mxu0 0.0
  %585 = vmatmul.mubr.f32.gmra.mrb[0].mxu0 %v499
  %v586 = vpop.f32.mrb[0].mxu0
  %v587 = vadd.f32 0.0, %v586
  %v588 = vpop.f32.mrb[0].mxu0
  %589 = vmatprep.mubr.f32.mxu0 0.0
  %590 = vmatmul.mubr.f32.gmra.mrb[0].mxu0 %v502
  %v591 = vpop.f32.mrb[0].mxu0
  %v592 = vadd.f32 0.0, %v591
  %v593 = vpop.f32.mrb[0].mxu0
  %594 = vmatprep.mubr.f32.mxu0 0.0
  %595 = vmatmul.mubr.f32.gmra.mrb[0].mxu0 %v505
  %v596 = vpop.f32.mrb[0].mxu0
  %v597 = vadd.f32 0.0, %v596
  %v598 = vpop.f32.mrb[0].mxu0
  %599 = vdwg.mxu0
  %v600 = vadd.f32 %v480, %v577
  %v601 = vadd.f32 %v481, %v582
  %v602 = vadd.f32 %v482, %v587
  %v603 = vadd.f32 %v483, %v592
  %v604 = vadd.f32 %v484, %v597
  %v605 = vld [vmem:[%s2] sm:$0x1]
  %v607 = vlaneseq
  %v608 = vshrl.u32 %v607, 7
  %v609 = vsub.s32 0, %v608
  %v610 = vrot.slane %v605, %v609
  %v612 = vadd.f32 %v600, %v610
  %v613 = vadd.f32 %v601, %v610
  %v614 = vadd.f32 %v602, %v610
  %v615 = vadd.f32 %v603, %v610
  %v616 = vadd.f32 %v604, %v610
  %v617 = vmax.f32 %v612, 0.0
  %v618 = vmax.f32 %v613, 0.0
  %v619 = vmax.f32 %v614, 0.0
  %v620 = vmax.f32 %v615, 0.0
  %v621 = vmax.f32 %v616, 0.0
  %vm622 = vcmask 261120
  %623 = vst.msk [vmem:[%s3] sm:$0xff] %vm622, %v617
  %624 = vst.msk [vmem:[%s3 + $0x8] sm:$0xff] %vm622, %v618
  %625 = vst.msk [vmem:[%s3 + $0x10] sm:$0xff] %vm622, %v619
  %626 = vst.msk [vmem:[%s3 + $0x18] sm:$0xff] %vm622, %v620
  %627 = vst.msk [vmem:[%s3 + $0x20] sm:$0xff] %vm622, %v621
  // Predicated region
  $region14: #{tpu_custom_call.1} parent=0 // pred_check
    _
  $region15: #{tpu_custom_call.1} parent=0 // pred_check_branch
    %629 = sbr.rel (0) target = $region17
  $region16: #{tpu_custom_call.1} parent=0 // pred_region
    _
  $region17: #{tpu_custom_call.1} parent=0 // pred_fallthru
    _
  // Predicated region
  $region18: #{tpu_custom_call.1} parent=0 // pred_check
    _
  $region19: #{tpu_custom_call.1} parent=0 // pred_check_branch
    %631 = sbr.rel (0) target = $region21
  $region20: #{tpu_custom_call.1} parent=0 // pred_region
    _
  $region21: #{tpu_custom_call.1} parent=0 // pred_fallthru
    _

</llo_original>
